<compile_context>
chip_gen: v5e
topology: v5e:2x2
jax: 0.10.0
libtpu: 0.0.40
codegen_flags: <defaults>
</compile_context>

<pallas_src>
import jax
import jax.numpy as jnp
from jax import lax
from jax.experimental import pallas as pl
from jax.experimental.pallas import tpu as pltpu


def _count_nonzero_fold_kernel(x_ref, o_ref):
    # x_ref: (B, tm, tn) slab with the FULL reduction axis folded into the
    # block. One pass: compare, cast, reduce over the leading axis.
    x = x_ref[...]
    o_ref[...] = jnp.sum((x != 0).astype(jnp.int32), axis=0)


def _make_chunked_kernel(tb: int, B: int):
    # Reduction axis B is split into chunks of tb; grid axis 2 walks chunks
    # and accumulates into the resident output block.
    needs_mask = (B % tb) != 0

    def kernel(x_ref, o_ref):
        k = pl.program_id(2)

        @pl.when(k == 0)
        def _():
            o_ref[...] = jnp.zeros_like(o_ref)

        x = x_ref[...]
        counts = (x != 0).astype(jnp.int32)
        if needs_mask:
            # Last chunk is padded along B; padded rows hold unspecified data
            # and must not contribute to the count.
            idx = lax.broadcasted_iota(jnp.int32, counts.shape, 0) + k * tb
            counts = jnp.where(idx < B, counts, 0)
        o_ref[...] += jnp.sum(counts, axis=0)

    return kernel


def count_nonzero_dim_neg3(
    x: jax.Array,
    *,
    tm: int = 256,
    tn: int = 512,
    tb: int | None = None,
    vmem_budget_bytes: int = 32 * 1024 * 1024,
) -> jax.Array:
    """count_nonzero over dim -3 (axis 0) of a 3-D array, computed in Pallas.

    Block-shape legality: tm is a multiple of 8 (or equals M), tn is a
    multiple of 128 (or equals N); the leading (reduction) block dim has no
    (8,128) constraint. Edge tiles from the cdiv grid on M/N are padded by
    Pallas and their out-of-bounds output writes are dropped.
    """
    B, M, N = x.shape

    tm_eff = tm if M > tm else M   # 256 is a multiple of 8; else full extent
    tn_eff = tn if N > tn else N   # 512 is a multiple of 128; else full extent

    itemsize = jnp.dtype(x.dtype).itemsize
    bytes_per_b_row = 2 * tm_eff * tn_eff * itemsize  # x2: double-buffered input

    if tb is None:
        tb_max = max(1, vmem_budget_bytes // max(1, bytes_per_b_row))
        tb = B if B <= tb_max else int(tb_max)
    tb = max(1, min(tb, B))

    if tb >= B:
        # Single-pass streaming path: whole reduction axis inside the block.
        grid = (pl.cdiv(M, tm_eff), pl.cdiv(N, tn_eff))
        return pl.pallas_call(
            _count_nonzero_fold_kernel,
            out_shape=jax.ShapeDtypeStruct((M, N), jnp.int32),
            grid_spec=pltpu.PrefetchScalarGridSpec(
                num_scalar_prefetch=0,
                grid=grid,
                in_specs=[
                    pl.BlockSpec((B, tm_eff, tn_eff), lambda i, j: (0, i, j)),
                ],
                out_specs=pl.BlockSpec((tm_eff, tn_eff), lambda i, j: (i, j)),
            ),
            compiler_params=pltpu.CompilerParams(
                dimension_semantics=("parallel", "parallel"),
            ),
        )(x)

    # Chunked-reduction path for large B: output block is resident across the
    # trailing "arbitrary" grid axis and accumulated in place.
    grid = (pl.cdiv(M, tm_eff), pl.cdiv(N, tn_eff), pl.cdiv(B, tb))
    return pl.pallas_call(
        _make_chunked_kernel(tb, B),
        out_shape=jax.ShapeDtypeStruct((M, N), jnp.int32),
        grid_spec=pltpu.PrefetchScalarGridSpec(
            num_scalar_prefetch=0,
            grid=grid,
            in_specs=[
                pl.BlockSpec((tb, tm_eff, tn_eff), lambda i, j, k: (k, i, j)),
            ],
            out_specs=pl.BlockSpec((tm_eff, tn_eff), lambda i, j, k: (i, j)),
        ),
        compiler_params=pltpu.CompilerParams(
            dimension_semantics=("parallel", "parallel", "arbitrary"),
        ),
    )(x)


if __name__ == "__main__":
    key = jax.random.PRNGKey(0)
    k1, k2, k3, k4 = jax.random.split(key, 4)

    # Shape from the module annotation: [2, 3, 4] float32, with real zeros.
    x = jax.random.normal(k1, (2, 3, 4), dtype=jnp.float32)
    x = jnp.where(jax.random.uniform(k2, (2, 3, 4)) < 0.4, 0.0, x)

    out = jax.block_until_ready(count_nonzero_dim_neg3(x))
    ref = jnp.sum(x != 0, axis=0).astype(jnp.int32)
    assert out.shape == (3, 4)
    assert out.dtype == jnp.int32
    assert jnp.array_equal(out, ref), "mismatch vs reference (small shape)"

    # Exercise the tiled / padded-edge-block path with small explicit tiles.
    x2 = jax.random.normal(k3, (2, 20, 300), dtype=jnp.float32)
    x2 = jnp.where(x2 < 0.0, 0.0, x2)  # plenty of zeros
    out2 = jax.block_until_ready(count_nonzero_dim_neg3(x2, tm=8, tn=128))
    ref2 = jnp.sum(x2 != 0, axis=0).astype(jnp.int32)
    assert jnp.array_equal(out2, ref2), "mismatch vs reference (tiled shape)"

    # Exercise the chunked-reduction path, including a masked (padded) last
    # B-chunk: B=5 with chunk size 2 -> chunks of 2, 2, 1.
    x3 = jax.random.normal(k4, (5, 16, 256), dtype=jnp.float32)
    x3 = jnp.where(x3 > 0.5, 0.0, x3)
    out3 = jax.block_until_ready(
        count_nonzero_dim_neg3(x3, tm=8, tn=128, tb=2)
    )
    ref3 = jnp.sum(x3 != 0, axis=0).astype(jnp.int32)
    assert jnp.array_equal(out3, ref3), "mismatch vs reference (chunked B)"

    print("KERNEL_OK")
</pallas_src>

<mosaic_0001>
module attributes {stable_mosaic.version = 11 : i64} {
  func.func @_count_nonzero_fold_kernel(%arg0: i32, %arg1: i32, %arg2: memref<2x3x4xf32, #tpu.memory_space<vmem>>, %arg3: memref<3x4xi32, #tpu.memory_space<vmem>>) attributes {dimension_semantics = [#tpu.dimension_semantics<parallel>, #tpu.dimension_semantics<parallel>], iteration_bounds = array<i64: 1, 1>, scalar_prefetch = 0 : i64, scratch_operands = 0 : i64, tpu.core_type = #tpu.core_type<tc>, window_params = [{transform_indices = @transform_0, window_bounds = array<i64: 2, 3, 4>}, {transform_indices = @transform_1, window_bounds = array<i64: 3, 4>}]} {
    %c0 = arith.constant 0 : index
    %c0_0 = arith.constant 0 : index
    %c0_1 = arith.constant 0 : index
    %0 = vector.load %arg2[%c0, %c0_0, %c0_1] : memref<2x3x4xf32, #tpu.memory_space<vmem>>, vector<2x3x4xf32>
    %cst = arith.constant 0.000000e+00 : f32
    %1 = vector.broadcast %cst : f32 to vector<2x3x4xf32>
    %2 = arith.cmpf one, %0, %1 : vector<2x3x4xf32>
    %3 = arith.extui %2 : vector<2x3x4xi1> to vector<2x3x4xi32>
    %cst_2 = arith.constant dense<0> : vector<3x4xi32>
    %4 = vector.multi_reduction <add>, %3, %cst_2 [0] : vector<2x3x4xi32> to vector<3x4xi32>
    %c0_3 = arith.constant 0 : index
    %c0_4 = arith.constant 0 : index
    %5 = vector.load %arg3[%c0_3, %c0_4] : memref<3x4xi32, #tpu.memory_space<vmem>>, vector<3x4xi32>
    tpu.vector_store %arg3[%c0_3, %c0_4], %4 {strides = array<i32>} : memref<3x4xi32, #tpu.memory_space<vmem>>, vector<3x4xi32>,
    return
  }
  func.func @transform_0(%arg0: i32, %arg1: i32) -> (i32, i32, i32) {
    %c0_i32 = arith.constant 0 : i32
    %c0_i32_0 = arith.constant 0 : i32
    return %c0_i32, %arg0, %arg1 : i32, i32, i32
  }
  func.func @transform_1(%arg0: i32, %arg1: i32) -> (i32, i32) {
    %c0_i32 = arith.constant 0 : i32
    return %arg0, %arg1 : i32, i32
  }
}

</mosaic_0001>

<llo_original>
// kernel: tpu_custom_call.1
$region0: #{tpu_custom_call.1}
  #allocation0 [shape = 'u32[]', space=smem, size = 0x4, offset = 0x4, fixed_abs, tag = 'smem constant byte address 0x4 - core index']
  #allocation1 [shape = 'u32[72,128]{1,0:T(1,128)}', space=vmem, size = 0x9000, scoped, tag = 'internal scratch']
  %s0 = inlined_call_operand.vmem [shape: f32[2,3,4], index: 0, kind: input, shape index: {}]
  %s1 = inlined_call_operand.hbm [shape: s32[3,4], index: 1, kind: output, shape index: {}]
  %s2 = sld [smem:[#allocation0]]
  $region14: #{tpu_custom_call.1} parent=0
    _
  %s4 = ssub.s32 1, %s2
  %s5 = scalar_select 0, %s4, %s2
  $region1: #{tpu_custom_call.1} parent=0
    #allocation2 [shape = 'u8[2048]{0}', space=vmem, size = 0x800, scoped, tag = 'output window, operand 0, single buffered']
    #allocation3 [shape = 's32[1]{0}', space=sflag, size = 0x4, scoped, tag = 'scoped memory for tpu_custom_call.1']
    %6 = vsyncpa [#allocation3], 0
    // Predicated region
    $region2: #{tpu_custom_call.1} parent=1 // pred_check
      _
    $region3: #{tpu_custom_call.1} parent=1 // pred_check_branch
      %8 = sbr.rel (0) target = $region5
    $region4: #{tpu_custom_call.1} parent=1 // pred_region
      _
    $region5: #{tpu_custom_call.1} parent=1 // pred_fallthru
      _
    %v9 = vld [vmem:[%s0] sm:$0x7]
    %v10 = vld [vmem:[%s0 + $0x4] sm:$0x7]
    %vm11 = vcmp.ne.f32.partialorder %v9, 0.0
    %vm12 = vcmp.ne.f32.partialorder %v10, 0.0
    %v13 = vsel %vm11, 1, 0
    %v14 = vsel %vm12, 1, 0
    %vm15 = vcmask 26624
    %v16 = vsel %vm15, %v13, 0
    %v17 = vsel %vm15, %v14, 0
    %v18 = vadd.s32 %v16, %v17
    %19 = vst.msk [vmem:[#allocation2] sm:$0x7] %vm15, %v18
    // Predicated region
    $region6: #{tpu_custom_call.1} parent=1 // pred_check
      _
    $region7: #{tpu_custom_call.1} parent=1 // pred_check_branch
      %21 = sbr.rel (0) target = $region9
    $region8: #{tpu_custom_call.1} parent=1 // pred_region
      %23 = vsyncadd [#allocation3], 0
      %s25 = sshll.u32 [#allocation2], 4
      %s26 = int_to_ptr.vmem [resolvable:$true] %s25
      %s27 = sshll.u32 %s1, 4
      %s28 = int_to_ptr.hbm [resolvable:$true] %s27
      %30 = dma.vmem_to_hbm [thread:$0]  %s26, 64, %s28, [#allocation3]
    $region9: #{tpu_custom_call.1} parent=1 // pred_fallthru
      _
    // Predicated region
    $region10: #{tpu_custom_call.1} parent=1 // pred_check
      _
    $region11: #{tpu_custom_call.1} parent=1 // pred_check_branch
      %32 = sbr.rel (0) target = $region13
    $region12: #{tpu_custom_call.1} parent=1 // pred_region
      %34 = dma.done [#allocation3], 64
    $region13: #{tpu_custom_call.1} parent=1 // pred_fallthru
      _
    %35 = vsyncpa [#allocation3], 1

</llo_original>
